<compile_context>
chip_gen: v7x
topology: tpu7x:2x2x1
jax: 0.10.0
libtpu: 0.0.40
codegen_flags: <defaults>
</compile_context>

<pallas_src>
import functools

import jax
import jax.numpy as jnp
from jax.experimental import pallas as pl
from jax.experimental.pallas import tpu as pltpu


def _round_up(x, m):
    return (x + m - 1) // m * m


def _conv_stats_kernel(lhs_ref, w_ref, y_ref, stats_ref):
    """One GEMM tile of the folded-tap conv + streaming BN statistics.

    lhs_ref:   (TM, KP)  im2col rows (zero padded rows/cols)
    w_ref:     (KP, CP)  flattened HWIO conv weight (zero padded)
    y_ref:     (TM, CP)  conv output tile (lane-dense, CP multiple of 128)
    stats_ref: (2, CP)   resident accumulator: row 0 = sum, row 1 = sum of squares
    """
    i = pl.program_id(0)

    # Single well-shaped MXU matmul per tile (f32 accumulate).
    y = jnp.dot(lhs_ref[...], w_ref[...], preferred_element_type=jnp.float32)
    y_ref[...] = y

    @pl.when(i == 0)
    def _():
        stats_ref[...] = jnp.zeros_like(stats_ref)

    ssum = jnp.sum(y, axis=0, keepdims=True)       # (1, CP)
    ssq = jnp.sum(y * y, axis=0, keepdims=True)    # (1, CP)
    stats_ref[0:1, :] = stats_ref[0:1, :] + ssum
    stats_ref[1:2, :] = stats_ref[1:2, :] + ssq


def _bn_relu_kernel(y_ref, scale_ref, shift_ref, o_ref):
    """Apply precomputed per-channel affine (folded BN) + ReLU on one tile."""
    o_ref[...] = jnp.maximum(y_ref[...] * scale_ref[...] + shift_ref[...], 0.0)


def basic_conv2d(x_nchw, w_oihw, gamma, beta, *, padding=1, eps=1e-3, tm=256):
    """Pallas implementation of BasicConv2d.forward. Returns NCHW output."""
    N, Cin, H, W = x_nchw.shape
    Cout, Cin_w, KH, KW = w_oihw.shape
    assert Cin == Cin_w

    Ho = H + 2 * padding - KH + 1
    Wo = W + 2 * padding - KW + 1

    # ---- Wrapper-side layout prep (plain JAX glue) -------------------------
    # Channel-last so channels sit on the TPU lane axis; im2col folds all
    # KH*KW taps and Cin into a single contraction axis -> the conv is ONE GEMM.
    x_nhwc = jnp.transpose(x_nchw, (0, 2, 3, 1))
    xp = jnp.pad(x_nhwc, ((0, 0), (padding, padding), (padding, padding), (0, 0)))
    cols = []
    for kh in range(KH):
        for kw in range(KW):
            cols.append(xp[:, kh:kh + Ho, kw:kw + Wo, :])
    patches = jnp.concatenate(cols, axis=-1)                  # (N, Ho, Wo, KH*KW*Cin)

    K = KH * KW * Cin
    M = N * Ho * Wo
    KP = _round_up(K, 8)              # sublane-pad the contraction axis
    CP = _round_up(Cout, 128)         # lane-dense output channels (unmasked stores)
    tm = min(tm, _round_up(M, 8))     # row-tile size
    MP = _round_up(M, tm)

    lhs = patches.reshape(M, K).astype(jnp.float32)
    lhs = jnp.pad(lhs, ((0, MP - M), (0, KP - K)))            # (MP, KP)

    w_flat = jnp.transpose(w_oihw, (2, 3, 1, 0)).reshape(K, Cout).astype(jnp.float32)
    w_flat = jnp.pad(w_flat, ((0, KP - K), (0, CP - Cout)))   # (KP, CP)

    grid = (MP // tm,)

    # ---- Pass 1: conv GEMM + streaming per-channel sums --------------------
    y_flat, stats = pl.pallas_call(
        _conv_stats_kernel,
        out_shape=(
            jax.ShapeDtypeStruct((MP, CP), jnp.float32),
            jax.ShapeDtypeStruct((2, CP), jnp.float32),
        ),
        grid=grid,
        in_specs=[
            pl.BlockSpec((tm, KP), lambda i: (i, 0)),
            pl.BlockSpec((KP, CP), lambda i: (0, 0)),
        ],
        out_specs=(
            pl.BlockSpec((tm, CP), lambda i: (i, 0)),
            pl.BlockSpec((2, CP), lambda i: (0, 0)),   # resident accumulator
        ),
        compiler_params=pltpu.CompilerParams(
            dimension_semantics=("arbitrary",),        # stats carry across M tiles
            vmem_limit_bytes=32 * 1024 * 1024,
        ),
    )(lhs, w_flat)

    # ---- Tiny per-channel BN parameter math (CP elements, plain JAX) ------
    # Padded rows of `lhs` are all-zero so they contribute 0 to both sums;
    # divide by the true element count M.
    # TODO(synk): E[x^2]-E[x]^2 can cancel for very large-mean activations;
    # switch to a centered second pass if that regime matters.
    count = jnp.float32(M)
    mean = stats[0] / count
    var = stats[1] / count - mean * mean
    inv_std = jax.lax.rsqrt(var + eps)
    g = jnp.pad(gamma.astype(jnp.float32), (0, CP - Cout))
    b = jnp.pad(beta.astype(jnp.float32), (0, CP - Cout))
    scale = (g * inv_std).reshape(1, CP)
    shift = (b - mean * g * inv_std).reshape(1, CP)

    # ---- Pass 2: normalize + ReLU (lane-dense, fully parallel) -------------
    out_flat = pl.pallas_call(
        _bn_relu_kernel,
        out_shape=jax.ShapeDtypeStruct((MP, CP), jnp.float32),
        grid=grid,
        in_specs=[
            pl.BlockSpec((tm, CP), lambda i: (i, 0)),
            pl.BlockSpec((1, CP), lambda i: (0, 0)),
            pl.BlockSpec((1, CP), lambda i: (0, 0)),
        ],
        out_specs=pl.BlockSpec((tm, CP), lambda i: (i, 0)),
        compiler_params=pltpu.CompilerParams(
            dimension_semantics=("parallel",),
            vmem_limit_bytes=32 * 1024 * 1024,
        ),
    )(y_flat, scale, shift)

    out_nhwc = out_flat[:M, :Cout].reshape(N, Ho, Wo, Cout)
    return jnp.transpose(out_nhwc, (0, 3, 1, 2))               # back to NCHW
    # TODO(synk): running_mean/running_var buffers (module state) are not updated;
    # this matches the forward output only.


def _reference(x_nchw, w_oihw, gamma, beta, *, padding=1, eps=1e-3):
    """Pure-JAX reference (training-mode BN, matching nn.BatchNorm2d defaults)."""
    y = jax.lax.conv_general_dilated(
        x_nchw, w_oihw, window_strides=(1, 1),
        padding=[(padding, padding), (padding, padding)],
        dimension_numbers=('NCHW', 'OIHW', 'NCHW'))
    mean = y.mean(axis=(0, 2, 3), keepdims=True)
    var = ((y - mean) ** 2).mean(axis=(0, 2, 3), keepdims=True)
    yn = (y - mean) * jax.lax.rsqrt(var + eps)
    yn = yn * gamma.reshape(1, -1, 1, 1) + beta.reshape(1, -1, 1, 1)
    return jnp.maximum(yn, 0.0)


if __name__ == "__main__":
    # Module config: BasicConv2d(in_channels=4, out_channels=8, kernel_size=3, padding=1)
    N, Cin, H, W = 2, 4, 16, 16
    Cout, KH, KW = 8, 3, 3
    padding = 1

    key = jax.random.PRNGKey(0)
    kx, kw = jax.random.split(key)
    x = jax.random.normal(kx, (N, Cin, H, W), dtype=jnp.float32)
    # Conv2d weight (bias=False), deterministic init.
    w = jax.random.normal(kw, (Cout, Cin, KH, KW), dtype=jnp.float32) * 0.1
    # BatchNorm2d default init: gamma=1, beta=0.
    gamma = jnp.ones((Cout,), dtype=jnp.float32)
    beta = jnp.zeros((Cout,), dtype=jnp.float32)

    out = basic_conv2d(x, w, gamma, beta, padding=padding, eps=1e-3)
    out = jax.block_until_ready(out)

    ref = _reference(x, w, gamma, beta, padding=padding, eps=1e-3)
    assert out.shape == (N, Cout, H, W)
    assert jnp.max(jnp.abs(out - ref)) < 1e-4, "mismatch vs reference"

    print("KERNEL_OK")
</pallas_src>

<mosaic_0001>
module attributes {stable_mosaic.version = 11 : i64} {
  func.func @_conv_stats_kernel(%arg0: i32, %arg1: memref<256x40xf32, #tpu.memory_space<vmem>>, %arg2: memref<40x128xf32, #tpu.memory_space<vmem>>, %arg3: memref<256x128xf32, #tpu.memory_space<vmem>>, %arg4: memref<2x128xf32, #tpu.memory_space<vmem>>) attributes {dimension_semantics = [#tpu.dimension_semantics<arbitrary>], iteration_bounds = array<i64: 2>, scalar_prefetch = 0 : i64, scratch_operands = 0 : i64, tpu.core_type = #tpu.core_type<tc>, window_params = [{transform_indices = @transform_0, window_bounds = array<i64: 256, 40>}, {pipeline_mode = #tpu.pipeline_mode<synchronous>, transform_indices = @transform_1, window_bounds = array<i64: 40, 128>}, {transform_indices = @transform_2, window_bounds = array<i64: 256, 128>}, {pipeline_mode = #tpu.pipeline_mode<synchronous>, transform_indices = @transform_3, window_bounds = array<i64: 2, 128>}]} {
    %c0 = arith.constant 0 : index
    %c0_0 = arith.constant 0 : index
    %0 = vector.load %arg1[%c0, %c0_0] : memref<256x40xf32, #tpu.memory_space<vmem>>, vector<256x40xf32>
    %c0_1 = arith.constant 0 : index
    %c0_2 = arith.constant 0 : index
    %1 = vector.load %arg2[%c0_1, %c0_2] : memref<40x128xf32, #tpu.memory_space<vmem>>, vector<40x128xf32>
    %cst = arith.constant dense<0.000000e+00> : vector<256x128xf32>
    %2 = tpu.matmul %0, %1, %cst {dimension_numbers = #tpu.dot_dimension_numbers<[1], [0], [0], [1], [0, 0, 1, 1], [], []>} : vector<256x40xf32>, vector<40x128xf32>, vector<256x128xf32> -> vector<256x128xf32>
    %c0_3 = arith.constant 0 : index
    %c0_4 = arith.constant 0 : index
    %3 = vector.load %arg3[%c0_3, %c0_4] : memref<256x128xf32, #tpu.memory_space<vmem>>, vector<256x128xf32>
    tpu.vector_store %arg3[%c0_3, %c0_4], %2 {strides = array<i32>} : memref<256x128xf32, #tpu.memory_space<vmem>>, vector<256x128xf32>,
    %c0_i32 = arith.constant 0 : i32
    %4 = arith.cmpi eq, %arg0, %c0_i32 : i32
    %5 = arith.extui %4 : i1 to i32
    %c0_i32_5 = arith.constant 0 : i32
    %6 = arith.cmpi ne, %5, %c0_i32_5 : i32
    scf.if %6 {
      %cst_15 = arith.constant 0.000000e+00 : f32
      %18 = vector.broadcast %cst_15 : f32 to vector<2x128xf32>
      %c0_16 = arith.constant 0 : index
      %c0_17 = arith.constant 0 : index
      %19 = vector.load %arg4[%c0_16, %c0_17] : memref<2x128xf32, #tpu.memory_space<vmem>>, vector<2x128xf32>
      tpu.vector_store %arg4[%c0_16, %c0_17], %18 {strides = array<i32>} : memref<2x128xf32, #tpu.memory_space<vmem>>, vector<2x128xf32>,
    } else {
    }
    %cst_6 = arith.constant dense<0.000000e+00> : vector<128xf32>
    %7 = vector.multi_reduction <add>, %2, %cst_6 [0] : vector<256x128xf32> to vector<128xf32>
    %8 = vector.shape_cast %7 : vector<128xf32> to vector<1x128xf32>
    %9 = arith.mulf %2, %2 : vector<256x128xf32>
    %cst_7 = arith.constant dense<0.000000e+00> : vector<128xf32>
    %10 = vector.multi_reduction <add>, %9, %cst_7 [0] : vector<256x128xf32> to vector<128xf32>
    %11 = vector.shape_cast %10 : vector<128xf32> to vector<1x128xf32>
    %c0_8 = arith.constant 0 : index
    %c0_9 = arith.constant 0 : index
    %12 = vector.load %arg4[%c0_8, %c0_9] : memref<2x128xf32, #tpu.memory_space<vmem>>, vector<1x128xf32>
    %13 = arith.addf %12, %8 : vector<1x128xf32>
    %c0_10 = arith.constant 0 : index
    %c0_11 = arith.constant 0 : index
    %14 = vector.load %arg4[%c0_10, %c0_11] : memref<2x128xf32, #tpu.memory_space<vmem>>, vector<1x128xf32>
    tpu.vector_store %arg4[%c0_10, %c0_11], %13 {strides = array<i32>} : memref<2x128xf32, #tpu.memory_space<vmem>>, vector<1x128xf32>,
    %c1 = arith.constant 1 : index
    %c0_12 = arith.constant 0 : index
    %15 = vector.load %arg4[%c1, %c0_12] : memref<2x128xf32, #tpu.memory_space<vmem>>, vector<1x128xf32>
    %16 = arith.addf %15, %11 : vector<1x128xf32>
    %c1_13 = arith.constant 1 : index
    %c0_14 = arith.constant 0 : index
    %17 = vector.load %arg4[%c1_13, %c0_14] : memref<2x128xf32, #tpu.memory_space<vmem>>, vector<1x128xf32>
    tpu.vector_store %arg4[%c1_13, %c0_14], %16 {strides = array<i32>} : memref<2x128xf32, #tpu.memory_space<vmem>>, vector<1x128xf32>,
    return
  }
  func.func @transform_0(%arg0: i32) -> (i32, i32) {
    %c0_i32 = arith.constant 0 : i32
    %c0_i32_0 = arith.constant 0 : i32
    return %arg0, %c0_i32 : i32, i32
  }
  func.func @transform_1(%arg0: i32) -> (i32, i32) {
    %c0_i32 = arith.constant 0 : i32
    %c0_i32_0 = arith.constant 0 : i32
    %c0_i32_1 = arith.constant 0 : i32
    return %c0_i32, %c0_i32_0 : i32, i32
  }
  func.func @transform_2(%arg0: i32) -> (i32, i32) {
    %c0_i32 = arith.constant 0 : i32
    %c0_i32_0 = arith.constant 0 : i32
    return %arg0, %c0_i32 : i32, i32
  }
  func.func @transform_3(%arg0: i32) -> (i32, i32) {
    %c0_i32 = arith.constant 0 : i32
    %c0_i32_0 = arith.constant 0 : i32
    %c0_i32_1 = arith.constant 0 : i32
    return %c0_i32, %c0_i32_0 : i32, i32
  }
}

</mosaic_0001>

<llo_original>
// kernel: tpu_custom_call.1
$region0: #{tpu_custom_call.1}
  #allocation0 [shape = 'u32[]', space=smem, size = 0x4, offset = 0x4, fixed_abs, tag = 'smem constant byte address 0x4 - core index']
  #allocation1 [shape = 'u32[144,128]{1,0:T(1,128)}', space=vmem, size = 0x12000, scoped, tag = 'internal scratch']
  %s0 = inlined_call_operand.vmem [shape: f32[512,40], index: 0, kind: input, shape index: {}]
  %s1 = inlined_call_operand.vmem [shape: f32[40,128], index: 1, kind: input, shape index: {}]
  %s2 = inlined_call_operand.hbm [shape: f32[512,128], index: 2, kind: output, shape index: {0}]
  %s3 = inlined_call_operand.hbm [shape: f32[2,128], index: 3, kind: output, shape index: {1}]
  %4 = xla_tuple %s2, %s3
  %s5 = sld [smem:[#allocation0]]
  $region53: #{tpu_custom_call.1} parent=0
    _
  %s7 = ssub.s32 1, %s5
  %s8 = scalar_select 0, %s7, %s5
  $region1: #{tpu_custom_call.1} parent=0
    #allocation2 [shape = 'u8[262144]{0}', space=vmem, size = 0x40000, scoped, tag = 'output window, operand 0']
    #allocation3 [shape = 's32[2]{0}', space=sflag, size = 0x8, scoped, tag = 'scoped memory for tpu_custom_call.1']
    #allocation4 [shape = 'u8[1024]{0}', space=vmem, size = 0x400, scoped, tag = 'output window, operand 1, single buffered']
    #allocation5 [shape = 's32[1]{0}', space=sflag, size = 0x4, scoped, tag = 'scoped memory for tpu_custom_call.1']
    %9 = vsyncpa [#allocation3], 0
    %s10 = scalar_lea.sflag [#allocation3], 1
    %11 = vsyncpa %s10, 0
    %12 = vsyncpa [#allocation5], 0
    loop: start=0, step=1, limit=4
    $region2: #{tpu_custom_call.1} parent=1 // loop_pre_header
      _
    $region3: #{tpu_custom_call.1} parent=1 // loop_header
      %s14 = sphi 0, %s18
      %p15 = scmp.ge.s32.totalorder %s14, 4
      %s24 = sphi 0, %s26
      %s27 = sphi 0, %s24
      %s28 = sphi 0, %s27
      %s44 = sphi 0, %s28
      %s48 = sphi 0, %s48
      %s50 = sphi 0, %s48
      %s51 = sphi 0, %s50
      %s65 = sphi 0, %s51
      %s71 = sphi 0, %s73
      %s74 = sphi 0, %s71
      %s75 = sphi 0, %s74
      %s91 = sphi 0, %s75
      %s95 = sphi 0, %s95
      %s97 = sphi 0, %s95
      %s98 = sphi 0, %s97
      %s112 = sphi 0, %s98
    $region4: #{tpu_custom_call.1} parent=1 // loop_header_branch
      %17 = sbr.rel (%p15) target = $region8
    $region5: #{tpu_custom_call.1} parent=1 // loop_body
      %s19 = ssub.s32 %s14, 1
      %s20 = ssub.s32 %s14, 2
      %s21 = sadd.s32 %s14, 1
      %s22 = ssub.s32 %s14, %s21
      %p23 = scmp.eq.s32.totalorder %s22, 0
      %s25 = sadd.s32 %s24, 1
      %s26 = scalar_select %p23, %s24, %s25
      %p29 = pneg %p23
      %p30 = scmp.eq.s32.totalorder %s14, 1
      %p31 = por %p29, %p30
      %p32 = scmp.ne.s32.totalorder %s24, %s27
      %p33 = scmp.eq.s32.totalorder %s14, 0
      %p34 = por %p32, %p33
      %p35 = scmp.ne.s32.totalorder %s24, %s27
      %p36 = scmp.eq.s32.totalorder %s19, 1
      %p37 = por %p35, %p36
      %p38 = scmp.ne.s32.totalorder %s27, %s28
      %p39 = scmp.eq.s32.totalorder %s19, 0
      %p40 = por %p38, %p39
      %p41 = scmp.ne.s32.totalorder %s27, %s28
      %p42 = scmp.eq.s32.totalorder %s20, 1
      %p43 = por %p41, %p42
      %p45 = scmp.ne.s32.totalorder %s28, %s44
      %p46 = scmp.eq.s32.totalorder %s20, 0
      %p47 = por %p45, %p46
      %s49 = sadd.s32 %s48, 1
      %p52 = scmp.eq.s32.totalorder %s14, 1
      %p53 = scmp.ne.s32.totalorder %s48, %s50
      %p54 = scmp.eq.s32.totalorder %s14, 0
      %p55 = por %p53, %p54
      %p56 = scmp.ne.s32.totalorder %s48, %s50
      %p57 = scmp.eq.s32.totalorder %s19, 1
      %p58 = por %p56, %p57
      %p59 = scmp.ne.s32.totalorder %s50, %s51
      %p60 = scmp.eq.s32.totalorder %s19, 0
      %p61 = por %p59, %p60
      %p62 = scmp.ne.s32.totalorder %s50, %s51
      %p63 = scmp.eq.s32.totalorder %s20, 1
      %p64 = por %p62, %p63
      %p66 = scmp.ne.s32.totalorder %s51, %s65
      %p67 = scmp.eq.s32.totalorder %s20, 0
      %p68 = por %p66, %p67
      %s69 = ssub.s32 %s14, %s21
      %p70 = scmp.eq.s32.totalorder %s69, 0
      %s72 = sadd.s32 %s71, 1
      %s73 = scalar_select %p70, %s71, %s72
      %p76 = pneg %p70
      %p77 = scmp.eq.s32.totalorder %s14, 1
      %p78 = por %p76, %p77
      %p79 = scmp.ne.s32.totalorder %s71, %s74
      %p80 = scmp.eq.s32.totalorder %s14, 0
      %p81 = por %p79, %p80
      %p82 = scmp.ne.s32.totalorder %s71, %s74
      %p83 = scmp.eq.s32.totalorder %s19, 1
      %p84 = por %p82, %p83
      %p85 = scmp.ne.s32.totalorder %s74, %s75
      %p86 = scmp.eq.s32.totalorder %s19, 0
      %p87 = por %p85, %p86
      %p88 = scmp.ne.s32.totalorder %s74, %s75
      %p89 = scmp.eq.s32.totalorder %s20, 1
      %p90 = por %p88, %p89
      %p92 = scmp.ne.s32.totalorder %s75, %s91
      %p93 = scmp.eq.s32.totalorder %s20, 0
      %p94 = por %p92, %p93
      %s96 = sadd.s32 %s95, 1
      %p99 = scmp.eq.s32.totalorder %s14, 1
      %p100 = scmp.ne.s32.totalorder %s95, %s97
      %p101 = scmp.eq.s32.totalorder %s14, 0
      %p102 = por %p100, %p101
      %p103 = scmp.ne.s32.totalorder %s95, %s97
      %p104 = scmp.eq.s32.totalorder %s19, 1
      %p105 = por %p103, %p104
      %p106 = scmp.ne.s32.totalorder %s97, %s98
      %p107 = scmp.eq.s32.totalorder %s19, 0
      %p108 = por %p106, %p107
      %p109 = scmp.ne.s32.totalorder %s97, %s98
      %p110 = scmp.eq.s32.totalorder %s20, 1
      %p111 = por %p109, %p110
      %p113 = scmp.ne.s32.totalorder %s98, %s112
      %p114 = scmp.eq.s32.totalorder %s20, 0
      %p115 = por %p113, %p114
      %p116 = scmp.le.s32.totalorder 1, %s14
      %p117 = scmp.lt.s32.totalorder %s14, 3
      %p118 = pnand %p116, %p117
      %p119 = pneg %p118
      // Predicated region
      $region9: #{tpu_custom_call.1} parent=5 // pred_check
        _
      $region10: #{tpu_custom_call.1} parent=5 // pred_check_branch
        %121 = sbr.rel (%p118) target = $region12
      $region11: #{tpu_custom_call.1} parent=5 // pred_region
        %s122 = ssub.s32 %s14, 1
        // Predicated region
        $region13: #{tpu_custom_call.1} parent=11 // pred_check
          %p123 = pneg %p61
        $region14: #{tpu_custom_call.1} parent=11 // pred_check_branch
          %125 = sbr.rel (%p123) target = $region16
        $region15: #{tpu_custom_call.1} parent=11 // pred_region
          _
        $region16: #{tpu_custom_call.1} parent=11 // pred_fallthru
          _
      $region12: #{tpu_custom_call.1} parent=5 // pred_fallthru
        _
      %p126 = scmp.lt.s32.totalorder %s14, 2
      // Predicated region
      $region17: #{tpu_custom_call.1} parent=5 // pred_check
        %p127 = pneg %p126
      $region18: #{tpu_custom_call.1} parent=5 // pred_check_branch
        %129 = sbr.rel (%p127) target = $region20
      $region19: #{tpu_custom_call.1} parent=5 // pred_region
        // Predicated region
        $region21: #{tpu_custom_call.1} parent=19 // pred_check
          %p130 = pneg %p34
        $region22: #{tpu_custom_call.1} parent=19 // pred_check_branch
          %132 = sbr.rel (%p130) target = $region24
        $region23: #{tpu_custom_call.1} parent=19 // pred_region
          %s133 = smul.u32 32, %s14
          %p134 = scmp.lt.s32.totalorder %s133, 63
          %s135 = scalar_select %p134, %s133, 63
          %s136 = smul.addr %s135, 8
          %s137 = scalar_lea.vmem %s0, %s136
          %s138 = smul.u32 32, %s14
        $region24: #{tpu_custom_call.1} parent=19 // pred_fallthru
          _
      $region20: #{tpu_custom_call.1} parent=5 // pred_fallthru
        _
      %p139 = scmp.le.s32.totalorder 1, %s14
      %p140 = scmp.lt.s32.totalorder %s14, 3
      %p141 = pnand %p139, %p140
      %p142 = pneg %p141
      // Predicated region
      $region25: #{tpu_custom_call.1} parent=5 // pred_check
        _
      $region26: #{tpu_custom_call.1} parent=5 // pred_check_branch
        %144 = sbr.rel (%p141) target = $region28
      $region27: #{tpu_custom_call.1} parent=5 // pred_region
        %s145 = ssub.s32 %s14, 1
        %s146 = smul.u32 32, %s19
        %p147 = scmp.lt.s32.totalorder %s146, 63
        %s148 = scalar_select %p147, %s146, 63
        %s149 = smul.addr %s148, 8
        %s150 = scalar_lea.vmem %s0, %s149
        %p151 = pneg %p40
        %p152 = pneg %p37
        %p153 = pneg %p61
        %p154 = pneg %p58
        %p155 = pneg %p87
        %p156 = pneg %p84
        %s157 = sand.u32 %s74, 1
        %s158 = scalar_lea.sflag [#allocation3], %s157
        %s159 = sand.u32 %s74, 1
        %s160 = smul.addr %s159, 256
        %s161 = scalar_lea.vmem [#allocation2], %s160
        %p162 = pneg %p108
        %p163 = pneg %p105
        %s164 = smul.u32 32, %s19
        %p165 = scmp.lt.s32.totalorder %s164, 63
        %s166 = scalar_select %p165, %s164, 63
        %s167 = smul.addr %s166, 8
        %s168 = scalar_lea.vmem %s0, %s167
        %s169 = smul.u32 32, %s19
        %s170 = smul.u32 32, %s19
        %v171 = vld [vmem:[%s168] sm:$0xff]
        %v172 = vld [vmem:[%s168 + $0x8] sm:$0xff]
        %v173 = vld [vmem:[%s168 + $0x10] sm:$0xff]
        %v174 = vld [vmem:[%s168 + $0x18] sm:$0xff]
        %v175 = vld [vmem:[%s168 + $0x20] sm:$0xff]
        %v176 = vld [vmem:[%s168 + $0x28] sm:$0xff]
        %v177 = vld [vmem:[%s168 + $0x30] sm:$0xff]
        %v178 = vld [vmem:[%s168 + $0x38] sm:$0xff]
        %v179 = vld [vmem:[%s168 + $0x40] sm:$0xff]
        %v180 = vld [vmem:[%s168 + $0x48] sm:$0xff]
        %v181 = vld [vmem:[%s168 + $0x50] sm:$0xff]
        %v182 = vld [vmem:[%s168 + $0x58] sm:$0xff]
        %v183 = vld [vmem:[%s168 + $0x60] sm:$0xff]
        %v184 = vld [vmem:[%s168 + $0x68] sm:$0xff]
        %v185 = vld [vmem:[%s168 + $0x70] sm:$0xff]
        %v186 = vld [vmem:[%s168 + $0x78] sm:$0xff]
        %v187 = vld [vmem:[%s168 + $0x80] sm:$0xff]
        %v188 = vld [vmem:[%s168 + $0x88] sm:$0xff]
        %v189 = vld [vmem:[%s168 + $0x90] sm:$0xff]
        %v190 = vld [vmem:[%s168 + $0x98] sm:$0xff]
        %v191 = vld [vmem:[%s168 + $0xa0] sm:$0xff]
        %v192 = vld [vmem:[%s168 + $0xa8] sm:$0xff]
        %v193 = vld [vmem:[%s168 + $0xb0] sm:$0xff]
        %v194 = vld [vmem:[%s168 + $0xb8] sm:$0xff]
        %v195 = vld [vmem:[%s168 + $0xc0] sm:$0xff]
        %v196 = vld [vmem:[%s168 + $0xc8] sm:$0xff]
        %v197 = vld [vmem:[%s168 + $0xd0] sm:$0xff]
        %v198 = vld [vmem:[%s168 + $0xd8] sm:$0xff]
        %v199 = vld [vmem:[%s168 + $0xe0] sm:$0xff]
        %v200 = vld [vmem:[%s168 + $0xe8] sm:$0xff]
        %v201 = vld [vmem:[%s168 + $0xf0] sm:$0xff]
        %v202 = vld [vmem:[%s168 + $0xf8] sm:$0xff]
        %v203 = vld [vmem:[%s1] sm:$0xff]
        %v204 = vld [vmem:[%s1 + $0x8] sm:$0xff]
        %v205 = vld [vmem:[%s1 + $0x10] sm:$0xff]
        %v206 = vld [vmem:[%s1 + $0x18] sm:$0xff]
        %v207 = vld [vmem:[%s1 + $0x20] sm:$0xff]
        %vm208 = vcmask 326656
        %v210 = vsel %vm208, %v171, 0
        %v213 = vsel %vm208, %v172, 0
        %v216 = vsel %vm208, %v173, 0
        %v219 = vsel %vm208, %v174, 0
        %v222 = vsel %vm208, %v175, 0
        %v225 = vsel %vm208, %v176, 0
        %v228 = vsel %vm208, %v177, 0
        %v231 = vsel %vm208, %v178, 0
        %v234 = vsel %vm208, %v179, 0
        %v237 = vsel %vm208, %v180, 0
        %v240 = vsel %vm208, %v181, 0
        %v243 = vsel %vm208, %v182, 0
        %v246 = vsel %vm208, %v183, 0
        %v249 = vsel %vm208, %v184, 0
        %v252 = vsel %vm208, %v185, 0
        %v255 = vsel %vm208, %v186, 0
        %v258 = vsel %vm208, %v187, 0
        %v261 = vsel %vm208, %v188, 0
        %v264 = vsel %vm208, %v189, 0
        %v267 = vsel %vm208, %v190, 0
        %v270 = vsel %vm208, %v191, 0
        %v273 = vsel %vm208, %v192, 0
        %v276 = vsel %vm208, %v193, 0
        %v279 = vsel %vm208, %v194, 0
        %v282 = vsel %vm208, %v195, 0
        %v285 = vsel %vm208, %v196, 0
        %v288 = vsel %vm208, %v197, 0
        %v291 = vsel %vm208, %v198, 0
        %v294 = vsel %vm208, %v199, 0
        %v297 = vsel %vm208, %v200, 0
        %v300 = vsel %vm208, %v201, 0
        %v303 = vsel %vm208, %v202, 0
        %305 = vmatprep.subr.mxu0 0.0
        %306 = vmatpush1.msra.mxu0 %v203
        %307 = vmatprep.subr.mxu0 0.0
        %308 = vmatpush1.msra.mxu0 %v204
        %309 = vmatprep.subr.mxu0 0.0
        %310 = vmatpush1.msra.mxu0 %v205
        %311 = vmatprep.subr.mxu0 0.0
        %312 = vmatpush1.msra.mxu0 %v206
        %313 = vmatprep.subr.mxu0 0.0
        %314 = vmatpush1.msra.mxu0 %v207
        %315 = vmatprep.subr.mxu0 0.0
        %316 = vmatpush1.msra.mxu0 0.0
        %317 = vmatprep.subr.mxu0 0.0
        %318 = vmatpush1.msra.mxu0 0.0
        %319 = vmatprep.subr.mxu0 0.0
        %320 = vmatpush1.msra.mxu0 0.0
        %321 = vmatprep.subr.mxu0 0.0
        %322 = vmatpush1.msra.mxu0 0.0
        %323 = vmatprep.subr.mxu0 0.0
        %324 = vmatpush1.msra.mxu0 0.0
        %325 = vmatprep.subr.mxu0 0.0
        %326 = vmatpush1.msra.mxu0 0.0
        %327 = vmatprep.subr.mxu0 0.0
        %328 = vmatpush1.msra.mxu0 0.0
        %329 = vmatprep.subr.mxu0 0.0
        %330 = vmatpush1.msra.mxu0 0.0
        %331 = vmatprep.subr.mxu0 0.0
        %332 = vmatpush1.msra.mxu0 0.0
        %333 = vmatprep.subr.mxu0 0.0
        %334 = vmatpush1.msra.mxu0 0.0
        %335 = vmatprep.subr.mxu0 0.0
        %336 = vmatpush1.msra.mxu0 0.0
        %337 = vmatprep.subr.mxu0 0.0
        %338 = vmatpush1.msra.mxu0 0.0
        %339 = vmatprep.subr.mxu0 0.0
        %340 = vmatpush1.msra.mxu0 0.0
        %341 = vmatprep.subr.mxu0 0.0
        %342 = vmatpush1.msra.mxu0 0.0
        %343 = vmatprep.subr.mxu0 0.0
        %344 = vmatpush1.msra.mxu0 0.0
        %345 = vmatprep.subr.mxu0 0.0
        %346 = vmatpush1.msra.mxu0 0.0
        %347 = vmatprep.subr.mxu0 0.0
        %348 = vmatpush1.msra.mxu0 0.0
        %349 = vmatprep.subr.mxu0 0.0
        %350 = vmatpush1.msra.mxu0 0.0
        %351 = vmatprep.subr.mxu0 0.0
        %352 = vmatpush1.msra.mxu0 0.0
        %353 = vmatprep.subr.mxu0 0.0
        %354 = vmatpush1.msra.mxu0 0.0
        %355 = vmatprep.subr.mxu0 0.0
        %356 = vmatpush1.msra.mxu0 0.0
        %357 = vmatprep.subr.mxu0 0.0
        %358 = vmatpush1.msra.mxu0 0.0
        %359 = vmatprep.subr.mxu0 0.0
        %360 = vmatpush1.msra.mxu0 0.0
        %361 = vmatprep.subr.mxu0 0.0
        %362 = vmatpush1.msra.mxu0 0.0
        %363 = vmatprep.subr.mxu0 0.0
        %364 = vmatpush1.msra.mxu0 0.0
        %365 = vmatprep.subr.mxu0 0.0
        %366 = vmatpush1.msra.mxu0 0.0
        %367 = vmatprep.subr.mxu0 0.0
        %368 = vmatpush1.msra.mxu0 0.0
        %369 = vmatprep.mubr.f32.mxu0 0.0
        %370 = vmatmul.mubr.f32.gmra.mrb[0].mxu0 %v210
        %v371 = vpop.f32.mrb[0].mxu0
        %v372 = vadd.f32 0.0, %v371
        %v373 = vpop.f32.mrb[0].mxu0
        %374 = vmatprep.mubr.f32.mxu0 0.0
        %375 = vmatmul.mubr.f32.gmra.mrb[0].mxu0 %v213
        %v376 = vpop.f32.mrb[0].mxu0
        %v377 = vadd.f32 0.0, %v376
        %v378 = vpop.f32.mrb[0].mxu0
        %379 = vmatprep.mubr.f32.mxu0 0.0
        %380 = vmatmul.mubr.f32.gmra.mrb[0].mxu0 %v216
        %v381 = vpop.f32.mrb[0].mxu0
        %v382 = vadd.f32 0.0, %v381
        %v383 = vpop.f32.mrb[0].mxu0
        %384 = vmatprep.mubr.f32.mxu0 0.0
        %385 = vmatmul.mubr.f32.gmra.mrb[0].mxu0 %v219
        %v386 = vpop.f32.mrb[0].mxu0
        %v387 = vadd.f32 0.0, %v386
        %v388 = vpop.f32.mrb[0].mxu0
        %389 = vmatprep.mubr.f32.mxu0 0.0
        %390 = vmatmul.mubr.f32.gmra.mrb[0].mxu0 %v222
        %v391 = vpop.f32.mrb[0].mxu0
        %v392 = vadd.f32 0.0, %v391
        %v393 = vpop.f32.mrb[0].mxu0
        %394 = vmatprep.mubr.f32.mxu0 0.0
        %395 = vmatmul.mubr.f32.gmra.mrb[0].mxu0 %v225
        %v396 = vpop.f32.mrb[0].mxu0
        %v397 = vadd.f32 0.0, %v396
        %v398 = vpop.f32.mrb[0].mxu0
        %399 = vmatprep.mubr.f32.mxu0 0.0
        %400 = vmatmul.mubr.f32.gmra.mrb[0].mxu0 %v228
        %v401 = vpop.f32.mrb[0].mxu0
        %v402 = vadd.f32 0.0, %v401
        %v403 = vpop.f32.mrb[0].mxu0
        %404 = vmatprep.mubr.f32.mxu0 0.0
        %405 = vmatmul.mubr.f32.gmra.mrb[0].mxu0 %v231
        %v406 = vpop.f32.mrb[0].mxu0
        %v407 = vadd.f32 0.0, %v406
        %v408 = vpop.f32.mrb[0].mxu0
        %409 = vmatprep.mubr.f32.mxu0 0.0
        %410 = vmatmul.mubr.f32.gmra.mrb[0].mxu0 %v234
        %v411 = vpop.f32.mrb[0].mxu0
        %v412 = vadd.f32 0.0, %v411
        %v413 = vpop.f32.mrb[0].mxu0
        %414 = vmatprep.mubr.f32.mxu0 0.0
        %415 = vmatmul.mubr.f32.gmra.mrb[0].mxu0 %v237
        %v416 = vpop.f32.mrb[0].mxu0
        %v417 = vadd.f32 0.0, %v416
        %v418 = vpop.f32.mrb[0].mxu0
        %419 = vmatprep.mubr.f32.mxu0 0.0
        %420 = vmatmul.mubr.f32.gmra.mrb[0].mxu0 %v240
        %v421 = vpop.f32.mrb[0].mxu0
        %v422 = vadd.f32 0.0, %v421
        %v423 = vpop.f32.mrb[0].mxu0
        %424 = vmatprep.mubr.f32.mxu0 0.0
        %425 = vmatmul.mubr.f32.gmra.mrb[0].mxu0 %v243
        %v426 = vpop.f32.mrb[0].mxu0
        %v427 = vadd.f32 0.0, %v426
        %v428 = vpop.f32.mrb[0].mxu0
        %429 = vmatprep.mubr.f32.mxu0 0.0
        %430 = vmatmul.mubr.f32.gmra.mrb[0].mxu0 %v246
        %v431 = vpop.f32.mrb[0].mxu0
        %v432 = vadd.f32 0.0, %v431
        %v433 = vpop.f32.mrb[0].mxu0
        %434 = vmatprep.mubr.f32.mxu0 0.0
        %435 = vmatmul.mubr.f32.gmra.mrb[0].mxu0 %v249
        %v436 = vpop.f32.mrb[0].mxu0
        %v437 = vadd.f32 0.0, %v436
        %v438 = vpop.f32.mrb[0].mxu0
        %439 = vmatprep.mubr.f32.mxu0 0.0
        %440 = vmatmul.mubr.f32.gmra.mrb[0].mxu0 %v252
        %v441 = vpop.f32.mrb[0].mxu0
        %v442 = vadd.f32 0.0, %v441
        %v443 = vpop.f32.mrb[0].mxu0
        %444 = vmatprep.mubr.f32.mxu0 0.0
        %445 = vmatmul.mubr.f32.gmra.mrb[0].mxu0 %v255
        %v446 = vpop.f32.mrb[0].mxu0
        %v447 = vadd.f32 0.0, %v446
        %v448 = vpop.f32.mrb[0].mxu0
        %449 = vmatprep.mubr.f32.mxu0 0.0
        %450 = vmatmul.mubr.f32.gmra.mrb[0].mxu0 %v258
        %v451 = vpop.f32.mrb[0].mxu0
        %v452 = vadd.f32 0.0, %v451
        %v453 = vpop.f32.mrb[0].mxu0
        %454 = vmatprep.mubr.f32.mxu0 0.0
        %455 = vmatmul.mubr.f32.gmra.mrb[0].mxu0 %v261
        %v456 = vpop.f32.mrb[0].mxu0
        %v457 = vadd.f32 0.0, %v456
        %v458 = vpop.f32.mrb[0].mxu0
        %459 = vmatprep.mubr.f32.mxu0 0.0
        %460 = vmatmul.mubr.f32.gmra.mrb[0].mxu0 %v264
        %v461 = vpop.f32.mrb[0].mxu0
        %v462 = vadd.f32 0.0, %v461
        %v463 = vpop.f32.mrb[0].mxu0
        %464 = vmatprep.mubr.f32.mxu0 0.0
        %465 = vmatmul.mubr.f32.gmra.mrb[0].mxu0 %v267
        %v466 = vpop.f32.mrb[0].mxu0
        %v467 = vadd.f32 0.0, %v466
        %v468 = vpop.f32.mrb[0].mxu0
        %469 = vmatprep.mubr.f32.mxu0 0.0
        %470 = vmatmul.mubr.f32.gmra.mrb[0].mxu0 %v270
        %v471 = vpop.f32.mrb[0].mxu0
        %v472 = vadd.f32 0.0, %v471
        %v473 = vpop.f32.mrb[0].mxu0
        %474 = vmatprep.mubr.f32.mxu0 0.0
        %475 = vmatmul.mubr.f32.gmra.mrb[0].mxu0 %v273
        %v476 = vpop.f32.mrb[0].mxu0
        %v477 = vadd.f32 0.0, %v476
        %v478 = vpop.f32.mrb[0].mxu0
        %479 = vmatprep.mubr.f32.mxu0 0.0
        %480 = vmatmul.mubr.f32.gmra.mrb[0].mxu0 %v276
        %v481 = vpop.f32.mrb[0].mxu0
        %v482 = vadd.f32 0.0, %v481
        %v483 = vpop.f32.mrb[0].mxu0
        %484 = vmatprep.mubr.f32.mxu0 0.0
        %485 = vmatmul.mubr.f32.gmra.mrb[0].mxu0 %v279
        %v486 = vpop.f32.mrb[0].mxu0
        %v487 = vadd.f32 0.0, %v486
        %v488 = vpop.f32.mrb[0].mxu0
        %489 = vmatprep.mubr.f32.mxu0 0.0
        %490 = vmatmul.mubr.f32.gmra.mrb[0].mxu0 %v282
        %v491 = vpop.f32.mrb[0].mxu0
        %v492 = vadd.f32 0.0, %v491
        %v493 = vpop.f32.mrb[0].mxu0
        %494 = vmatprep.mubr.f32.mxu0 0.0
        %495 = vmatmul.mubr.f32.gmra.mrb[0].mxu0 %v285
        %v496 = vpop.f32.mrb[0].mxu0
        %v497 = vadd.f32 0.0, %v496
        %v498 = vpop.f32.mrb[0].mxu0
        %499 = vmatprep.mubr.f32.mxu0 0.0
        %500 = vmatmul.mubr.f32.gmra.mrb[0].mxu0 %v288
        %v501 = vpop.f32.mrb[0].mxu0
        %v502 = vadd.f32 0.0, %v501
        %v503 = vpop.f32.mrb[0].mxu0
        %504 = vmatprep.mubr.f32.mxu0 0.0
        %505 = vmatmul.mubr.f32.gmra.mrb[0].mxu0 %v291
        %v506 = vpop.f32.mrb[0].mxu0
        %v507 = vadd.f32 0.0, %v506
        %v508 = vpop.f32.mrb[0].mxu0
        %509 = vmatprep.mubr.f32.mxu0 0.0
        %510 = vmatmul.mubr.f32.gmra.mrb[0].mxu0 %v294
        %v511 = vpop.f32.mrb[0].mxu0
        %v512 = vadd.f32 0.0, %v511
        %v513 = vpop.f32.mrb[0].mxu0
        %514 = vmatprep.mubr.f32.mxu0 0.0
        %515 = vmatmul.mubr.f32.gmra.mrb[0].mxu0 %v297
        %v516 = vpop.f32.mrb[0].mxu0
        %v517 = vadd.f32 0.0, %v516
        %v518 = vpop.f32.mrb[0].mxu0
        %519 = vmatprep.mubr.f32.mxu0 0.0
        %520 = vmatmul.mubr.f32.gmra.mrb[0].mxu0 %v300
        %v521 = vpop.f32.mrb[0].mxu0
        %v522 = vadd.f32 0.0, %v521
        %v523 = vpop.f32.mrb[0].mxu0
        %524 = vmatprep.mubr.f32.mxu0 0.0
        %525 = vmatmul.mubr.f32.gmra.mrb[0].mxu0 %v303
        %v526 = vpop.f32.mrb[0].mxu0
        %v527 = vadd.f32 0.0, %v526
        %v528 = vpop.f32.mrb[0].mxu0
        %529 = vdwg.mxu0
        %530 = vst [vmem:[%s161] sm:$0xff] %v372
        %531 = vst [vmem:[%s161 + $0x8] sm:$0xff] %v377
        %532 = vst [vmem:[%s161 + $0x10] sm:$0xff] %v382
        %533 = vst [vmem:[%s161 + $0x18] sm:$0xff] %v387
        %534 = vst [vmem:[%s161 + $0x20] sm:$0xff] %v392
        %535 = vst [vmem:[%s161 + $0x28] sm:$0xff] %v397
        %536 = vst [vmem:[%s161 + $0x30] sm:$0xff] %v402
        %537 = vst [vmem:[%s161 + $0x38] sm:$0xff] %v407
        %538 = vst [vmem:[%s161 + $0x40] sm:$0xff] %v412
        %539 = vst [vmem:[%s161 + $0x48] sm:$0xff] %v417
        %540 = vst [vmem:[%s161 + $0x50] sm:$0xff] %v422
        %541 = vst [vmem:[%s161 + $0x58] sm:$0xff] %v427
        %542 = vst [vmem:[%s161 + $0x60] sm:$0xff] %v432
        %543 = vst [vmem:[%s161 + $0x68] sm:$0xff] %v437
        %544 = vst [vmem:[%s161 + $0x70] sm:$0xff] %v442
        %545 = vst [vmem:[%s161 + $0x78] sm:$0xff] %v447
        %546 = vst [vmem:[%s161 + $0x80] sm:$0xff] %v452
        %547 = vst [vmem:[%s161 + $0x88] sm:$0xff] %v457
        %548 = vst [vmem:[%s161 + $0x90] sm:$0xff] %v462
        %549 = vst [vmem:[%s161 + $0x98] sm:$0xff] %v467
        %550 = vst [vmem:[%s161 + $0xa0] sm:$0xff] %v472
        %551 = vst [vmem:[%s161 + $0xa8] sm:$0xff] %v477
        %552 = vst [vmem:[%s161 + $0xb0] sm:$0xff] %v482
        %553 = vst [vmem:[%s161 + $0xb8] sm:$0xff] %v487
        %554 = vst [vmem:[%s161 + $0xc0] sm:$0xff] %v492
        %555 = vst [vmem:[%s161 + $0xc8] sm:$0xff] %v497
        %556 = vst [vmem:[%s161 + $0xd0] sm:$0xff] %v502
        %557 = vst [vmem:[%s161 + $0xd8] sm:$0xff] %v507
        %558 = vst [vmem:[%s161 + $0xe0] sm:$0xff] %v512
        %559 = vst [vmem:[%s161 + $0xe8] sm:$0xff] %v517
        %560 = vst [vmem:[%s161 + $0xf0] sm:$0xff] %v522
        %561 = vst [vmem:[%s161 + $0xf8] sm:$0xff] %v527
        %p562 = scmp.eq.s32.totalorder %s19, 0
        // Predicated region
        $region29: #{tpu_custom_call.1} parent=27 // pred_check
          %p563 = pneg %p562
        $region30: #{tpu_custom_call.1} parent=27 // pred_check_branch
          %565 = sbr.rel (%p563) target = $region32
        $region31: #{tpu_custom_call.1} parent=27 // pred_region
          %566 = vst [vmem:[#allocation4] sm:$0x3] 0.0
        $region32: #{tpu_custom_call.1} parent=27 // pred_fallthru
          _
        %v567 = vadd.f32 %v372, %v377
        %v568 = vadd.f32 %v567, %v382
        %v569 = vadd.f32 %v568, %v387
        %v570 = vadd.f32 %v569, %v392
        %v571 = vadd.f32 %v570, %v397
        %v572 = vadd.f32 %v571, %v402
        %v573 = vadd.f32 %v572, %v407
        %v574 = vadd.f32 %v573, %v412
        %v575 = vadd.f32 %v574, %v417
        %v576 = vadd.f32 %v575, %v422
        %v577 = vadd.f32 %v576, %v427
        %v578 = vadd.f32 %v577, %v432
        %v579 = vadd.f32 %v578, %v437
        %v580 = vadd.f32 %v579, %v442
        %v581 = vadd.f32 %v580, %v447
        %v582 = vadd.f32 %v581, %v452
        %v583 = vadd.f32 %v582, %v457
        %v584 = vadd.f32 %v583, %v462
        %v585 = vadd.f32 %v584, %v467
        %v586 = vadd.f32 %v585, %v472
        %v587 = vadd.f32 %v586, %v477
        %v588 = vadd.f32 %v587, %v482
        %v589 = vadd.f32 %v588, %v487
        %v590 = vadd.f32 %v589, %v492
        %v591 = vadd.f32 %v590, %v497
        %v592 = vadd.f32 %v591, %v502
        %v593 = vadd.f32 %v592, %v507
        %v594 = vadd.f32 %v593, %v512
        %v595 = vadd.f32 %v594, %v517
        %v596 = vadd.f32 %v595, %v522
        %v597 = vadd.f32 %v596, %v527
        %v598 = vrot.slane %v597, 4
        %v599 = vadd.f32 %v597, %v598
        %v600 = vrot.slane %v599, 2
        %v601 = vadd.f32 %v599, %v600
        %v602 = vrot.slane %v601, 1
        %v603 = vadd.f32 %v601, %v602
        %v604 = vmul.f32 %v372, %v372
        %v605 = vmul.f32 %v377, %v377
        %v606 = vmul.f32 %v382, %v382
        %v607 = vmul.f32 %v387, %v387
        %v608 = vmul.f32 %v392, %v392
        %v609 = vmul.f32 %v397, %v397
        %v610 = vmul.f32 %v402, %v402
        %v611 = vmul.f32 %v407, %v407
        %v612 = vmul.f32 %v412, %v412
        %v613 = vmul.f32 %v417, %v417
        %v614 = vmul.f32 %v422, %v422
        %v615 = vmul.f32 %v427, %v427
        %v616 = vmul.f32 %v432, %v432
        %v617 = vmul.f32 %v437, %v437
        %v618 = vmul.f32 %v442, %v442
        %v619 = vmul.f32 %v447, %v447
        %v620 = vmul.f32 %v452, %v452
        %v621 = vmul.f32 %v457, %v457
        %v622 = vmul.f32 %v462, %v462
        %v623 = vmul.f32 %v467, %v467
        %v624 = vmul.f32 %v472, %v472
        %v625 = vmul.f32 %v477, %v477
        %v626 = vmul.f32 %v482, %v482
        %v627 = vmul.f32 %v487, %v487
        %v628 = vmul.f32 %v492, %v492
        %v629 = vmul.f32 %v497, %v497
        %v630 = vmul.f32 %v502, %v502
        %v631 = vmul.f32 %v507, %v507
        %v632 = vmul.f32 %v512, %v512
        %v633 = vmul.f32 %v517, %v517
        %v634 = vmul.f32 %v522, %v522
        %v635 = vmul.f32 %v527, %v527
        %v636 = vadd.f32 %v604, %v605
        %v637 = vadd.f32 %v636, %v606
        %v638 = vadd.f32 %v637, %v607
        %v639 = vadd.f32 %v638, %v608
        %v640 = vadd.f32 %v639, %v609
        %v641 = vadd.f32 %v640, %v610
        %v642 = vadd.f32 %v641, %v611
        %v643 = vadd.f32 %v642, %v612
        %v644 = vadd.f32 %v643, %v613
        %v645 = vadd.f32 %v644, %v614
        %v646 = vadd.f32 %v645, %v615
        %v647 = vadd.f32 %v646, %v616
        %v648 = vadd.f32 %v647, %v617
        %v649 = vadd.f32 %v648, %v618
        %v650 = vadd.f32 %v649, %v619
        %v651 = vadd.f32 %v650, %v620
        %v652 = vadd.f32 %v651, %v621
        %v653 = vadd.f32 %v652, %v622
        %v654 = vadd.f32 %v653, %v623
        %v655 = vadd.f32 %v654, %v624
        %v656 = vadd.f32 %v655, %v625
        %v657 = vadd.f32 %v656, %v626
        %v658 = vadd.f32 %v657, %v627
        %v659 = vadd.f32 %v658, %v628
        %v660 = vadd.f32 %v659, %v629
        %v661 = vadd.f32 %v660, %v630
        %v662 = vadd.f32 %v661, %v631
        %v663 = vadd.f32 %v662, %v632
        %v664 = vadd.f32 %v663, %v633
        %v665 = vadd.f32 %v664, %v634
        %v666 = vadd.f32 %v665, %v635
        %v667 = vrot.slane %v666, 4
        %v668 = vadd.f32 %v666, %v667
        %v669 = vrot.slane %v668, 2
        %v670 = vadd.f32 %v668, %v669
        %v671 = vrot.slane %v670, 1
        %v672 = vadd.f32 %v670, %v671
        %v673 = vld [vmem:[#allocation4] sm:$0x1]
        %v674 = vadd.f32 %v673, %v603
        %675 = vst [vmem:[#allocation4] sm:$0x1] %v674
        %v676 = vld [vmem:[#allocation4 + $0x1] sm:$0x1]
        %v677 = vadd.f32 %v676, %v672
        %678 = vst [vmem:[#allocation4 + $0x1] sm:$0x1] %v677
        %s679 = sand.u32 %s74, 1
        %s680 = scalar_lea.sflag [#allocation3], %s679
        %s681 = sand.u32 %s74, 1
        %s682 = smul.addr %s681, 256
        %s683 = scalar_lea.vmem [#allocation2], %s682
        // Predicated region
        $region33: #{tpu_custom_call.1} parent=27 // pred_check
          %p684 = pneg %p84
        $region34: #{tpu_custom_call.1} parent=27 // pred_check_branch
          %686 = sbr.rel (%p684) target = $region36
        $region35: #{tpu_custom_call.1} parent=27 // pred_region
          %s687 = smul.u32 32, %s19
          %s689 = ssub.s32 4096, 4096
          %690 = vsyncadd %s680, %s689
          %s691 = smul.addr %s687, 128
          %s692 = scalar_lea.hbm %s2, %s691
          %s693 = sshll.u32 %s683, 4
          %s694 = int_to_ptr.vmem [resolvable:$true] %s693
          %699 = dma.vmem_to_hbm [thread:$0]  %s694, 4096, %s692, %s680, 128, 128, 8
        $region36: #{tpu_custom_call.1} parent=27 // pred_fallthru
          _
        // Predicated region
        $region37: #{tpu_custom_call.1} parent=27 // pred_check
          %p700 = pneg %p105
        $region38: #{tpu_custom_call.1} parent=27 // pred_check_branch
          %702 = sbr.rel (%p700) target = $region40
        $region39: #{tpu_custom_call.1} parent=27 // pred_region
          %s704 = ssub.s32 32, 32
          %705 = vsyncadd [#allocation5], %s704
          %s707 = sshll.u32 [#allocation4], 4
          %s708 = int_to_ptr.vmem [resolvable:$true] %s707
          %710 = dma.vmem_to_hbm [thread:$0]  %s708, 32, %s3, [#allocation5]
        $region40: #{tpu_custom_call.1} parent=27 // pred_fallthru
          _
        // Predicated region
        $region41: #{tpu_custom_call.1} parent=27 // pred_check
          %p711 = pneg %p105
        $region42: #{tpu_custom_call.1} parent=27 // pred_check_branch
          %713 = sbr.rel (%p711) target = $region44
        $region43: #{tpu_custom_call.1} parent=27 // pred_region
          %714 = dma.done [#allocation5], 32
        $region44: #{tpu_custom_call.1} parent=27 // pred_fallthru
          _
      $region28: #{tpu_custom_call.1} parent=5 // pred_fallthru
        _
      %p715 = scmp.le.s32.totalorder 2, %s14
      // Predicated region
      $region45: #{tpu_custom_call.1} parent=5 // pred_check
        %p716 = pneg %p715
      $region46: #{tpu_custom_call.1} parent=5 // pred_check_branch
        %718 = sbr.rel (%p716) target = $region48
      $region47: #{tpu_custom_call.1} parent=5 // pred_region
        %s719 = ssub.s32 %s14, 2
        // Predicated region
        $region49: #{tpu_custom_call.1} parent=47 // pred_check
          %p720 = pneg %p90
        $region50: #{tpu_custom_call.1} parent=47 // pred_check_branch
          %722 = sbr.rel (%p720) target = $region52
        $region51: #{tpu_custom_call.1} parent=47 // pred_region
          %s723 = sand.u32 %s75, 1
          %s724 = scalar_lea.sflag [#allocation3], %s723
          %s725 = sand.u32 %s75, 1
          %s726 = smul.addr %s725, 256
          %s727 = scalar_lea.vmem [#allocation2], %s726
          %728 = dma.done %s724, 4096
        $region52: #{tpu_custom_call.1} parent=47 // pred_fallthru
          _
      $region48: #{tpu_custom_call.1} parent=5 // pred_fallthru
        _
    $region6: #{tpu_custom_call.1} parent=1 // loop_footer
      %s18 = sadd.s32 1, %s14
    $region7: #{tpu_custom_call.1} parent=1 // loop_footer_branch
      %13 = sbr.rel target = $region3
    $region8: #{tpu_custom_call.1} parent=1 // loop_exit
      _
    %729 = vsyncpa [#allocation3], 1
    %s730 = scalar_lea.sflag [#allocation3], 1
    %731 = vsyncpa %s730, 1
    %732 = vsyncpa [#allocation5], 1

</llo_original>
